<compile_context>
chip_gen: v7x
topology: tpu7x:2x2x1
jax: 0.10.0
libtpu: 0.0.40
codegen_flags: <defaults>
</compile_context>

<pallas_src>
import functools

import jax
import jax.numpy as jnp
from jax.experimental import pallas as pl
from jax.experimental.pallas import tpu as pltpu


def _drop_path_kernel(scale_ref, x_ref, o_ref):
    """o[b, :] = x[b, :] * scale[b]  with scale in {0, 1/keep_prob}."""
    # scale_ref: [bb, 1] per-row scale (already in x's dtype).
    # x_ref / o_ref: [bb, bn] activation tile.
    o_ref[...] = x_ref[...] * scale_ref[...]


def _pick_feature_block(n):
    """Lane-dense feature tile: a multiple of 128 that divides n, else full dim."""
    if n % 128 != 0:
        return n  # full-extent last dim satisfies the (8,128) BlockSpec rule
    for cand in (2048, 1024, 512, 256, 128):
        if n % cand == 0:
            return cand
    return n


def _pick_batch_block(b, bn, itemsize, budget_bytes=2 << 20):
    """Largest batch tile keeping one x-block under ~2 MiB (so ~4x with double
    buffering fits v5e's 16 MiB scoped VMEM default and v7x's 64 MiB VMEM)."""
    max_rows = max(budget_bytes // max(bn * itemsize, 1), 1)
    if b <= max_rows:
        return b  # full batch dim is always a legal block
    cand = (min(max_rows, b) // 8) * 8
    while cand >= 8:
        if b % cand == 0:  # keep the grid exact (no ragged edge blocks)
            return cand
        cand -= 8
    return b  # fallback: full batch (correctness first)


@functools.partial(jax.jit, static_argnames=("drop_prob", "training"))
def drop_path(x, seed, *, drop_prob=0.0, training=False):
    """JAX/Pallas equivalent of DropPath.forward for x of shape [B, ...]."""
    if drop_prob == 0.0 or not training:
        return x  # identity, no kernel launch
    keep_prob = 1.0 - float(drop_prob)

    b = x.shape[0]
    n = 1
    for d in x.shape[1:]:
        n *= d
    flat = x.reshape(b, n)  # lane-dense [B, prod(rest)]

    # Per-row mask: floor(keep_prob + U[0,1)) in {0, 1} (exact PyTorch formula),
    # with 1/keep_prob folded in so the kernel is a single broadcast multiply.
    key = jax.random.PRNGKey(jnp.asarray(seed, jnp.int32))
    u = jax.random.uniform(key, (b, 1), dtype=jnp.float32)
    scale = (jnp.floor(jnp.float32(keep_prob) + u)
             * jnp.float32(1.0 / keep_prob)).astype(flat.dtype)

    bn = _pick_feature_block(n)
    bb = _pick_batch_block(b, bn, flat.dtype.itemsize)
    grid = (b // bb, n // bn)

    out = pl.pallas_call(
        _drop_path_kernel,
        out_shape=jax.ShapeDtypeStruct(flat.shape, flat.dtype),
        grid=grid,
        in_specs=[
            pl.BlockSpec((bb, 1), lambda i, j: (i, 0)),   # per-row scale
            pl.BlockSpec((bb, bn), lambda i, j: (i, j)),  # activation tile
        ],
        out_specs=pl.BlockSpec((bb, bn), lambda i, j: (i, j)),
        compiler_params=pltpu.CompilerParams(
            dimension_semantics=("parallel", "parallel")),
    )(scale, flat)
    return out.reshape(x.shape)


if __name__ == "__main__":
    key = jax.random.PRNGKey(0)
    k_x, k_seed = jax.random.split(key)

    B, C, H, W = 8, 4, 16, 16
    drop_prob = 0.25
    keep_prob = 1.0 - drop_prob

    x = jax.random.normal(k_x, (B, C, H, W), jnp.float32)
    seed = jax.random.randint(k_seed, (), 0, 2**31 - 1, dtype=jnp.int32)

    # Training path (the actual kernel).
    out = drop_path(x, seed, drop_prob=drop_prob, training=True)
    out = jax.block_until_ready(out)
    assert out.shape == x.shape
    assert bool(jnp.all(jnp.isfinite(out)))

    # Each batch row must be either all-zero (dropped) or exactly x / keep_prob (kept).
    out_rows = out.reshape(B, -1)
    ref_rows = (x / keep_prob).reshape(B, -1)
    dropped = jnp.all(out_rows == 0.0, axis=1)
    kept = jnp.all(jnp.abs(out_rows - ref_rows)
                   <= 1e-5 * jnp.abs(ref_rows) + 1e-6, axis=1)
    assert bool(jnp.all(dropped | kept))

    # Pure-JAX reference with the identical mask must match the kernel output.
    u_ref = jax.random.uniform(jax.random.PRNGKey(jnp.asarray(seed, jnp.int32)),
                               (B, 1), dtype=jnp.float32)
    mask_ref = jnp.floor(jnp.float32(keep_prob) + u_ref)
    ref = (x.reshape(B, -1) * (mask_ref * jnp.float32(1.0 / keep_prob))).reshape(x.shape)
    assert bool(jnp.allclose(out, ref, rtol=1e-6, atol=1e-6))

    # Eval mode and drop_prob == 0 are exact identities (no kernel launch).
    assert bool(jnp.all(drop_path(x, seed, drop_prob=drop_prob, training=False) == x))
    assert bool(jnp.all(drop_path(x, seed, drop_prob=0.0, training=True) == x))

    print("KERNEL_OK")
</pallas_src>

<mosaic_0001>
module attributes {stable_mosaic.version = 11 : i64} {
  func.func @_drop_path_kernel(%arg0: i32, %arg1: i32, %arg2: memref<8x1xf32, #tpu.memory_space<vmem>>, %arg3: memref<8x1024xf32, #tpu.memory_space<vmem>>, %arg4: memref<8x1024xf32, #tpu.memory_space<vmem>>) attributes {dimension_semantics = [#tpu.dimension_semantics<parallel>, #tpu.dimension_semantics<parallel>], iteration_bounds = array<i64: 1, 1>, scalar_prefetch = 0 : i64, scratch_operands = 0 : i64, tpu.core_type = #tpu.core_type<tc>, window_params = [{transform_indices = @transform_0, window_bounds = array<i64: 8, 1>}, {transform_indices = @transform_1, window_bounds = array<i64: 8, 1024>}, {transform_indices = @transform_2, window_bounds = array<i64: 8, 1024>}]} {
    %c0 = arith.constant 0 : index
    %c0_0 = arith.constant 0 : index
    %0 = vector.load %arg3[%c0, %c0_0] : memref<8x1024xf32, #tpu.memory_space<vmem>>, vector<8x1024xf32>
    %c0_1 = arith.constant 0 : index
    %c0_2 = arith.constant 0 : index
    %1 = vector.load %arg2[%c0_1, %c0_2] : memref<8x1xf32, #tpu.memory_space<vmem>>, vector<8x1xf32>
    %2 = vector.broadcast %1 : vector<8x1xf32> to vector<8x1024xf32>
    %3 = arith.mulf %0, %2 : vector<8x1024xf32>
    %c0_3 = arith.constant 0 : index
    %c0_4 = arith.constant 0 : index
    %4 = vector.load %arg4[%c0_3, %c0_4] : memref<8x1024xf32, #tpu.memory_space<vmem>>, vector<8x1024xf32>
    tpu.vector_store %arg4[%c0_3, %c0_4], %3 {strides = array<i32>} : memref<8x1024xf32, #tpu.memory_space<vmem>>, vector<8x1024xf32>,
    return
  }
  func.func @transform_0(%arg0: i32, %arg1: i32) -> (i32, i32) {
    %c0_i32 = arith.constant 0 : i32
    %c0_i32_0 = arith.constant 0 : i32
    return %arg0, %c0_i32 : i32, i32
  }
  func.func @transform_1(%arg0: i32, %arg1: i32) -> (i32, i32) {
    %c0_i32 = arith.constant 0 : i32
    return %arg0, %arg1 : i32, i32
  }
  func.func @transform_2(%arg0: i32, %arg1: i32) -> (i32, i32) {
    %c0_i32 = arith.constant 0 : i32
    return %arg0, %arg1 : i32, i32
  }
}

</mosaic_0001>

<llo_original>
// kernel: drop_path.1
$region0: #{drop_path.1}
  #allocation0 [shape = 'u32[]', space=smem, size = 0x4, offset = 0x4, fixed_abs, tag = 'smem constant byte address 0x4 - core index']
  #allocation1 [shape = 'u32[144,128]{1,0:T(1,128)}', space=vmem, size = 0x12000, scoped, tag = 'internal scratch']
  %s0 = inlined_call_operand.vmem [shape: f32[8,1], index: 0, kind: input, shape index: {}]
  %s1 = inlined_call_operand.vmem [shape: f32[8,1024], index: 1, kind: input, shape index: {}]
  %s2 = inlined_call_operand.vmem [shape: f32[8,1024], index: 2, kind: output, shape index: {}]
  %s3 = sld [smem:[#allocation0]]
  $region18: #{drop_path.1} parent=0
    _
  %s5 = ssub.s32 1, %s3
  %s6 = scalar_select 0, %s5, %s3
  // Predicated region
  $region2: #{drop_path.1} parent=0 // pred_check
    _
  $region3: #{drop_path.1} parent=0 // pred_check_branch
    %8 = sbr.rel (0) target = $region5
  $region4: #{drop_path.1} parent=0 // pred_region
    _
  $region5: #{drop_path.1} parent=0 // pred_fallthru
    _
  // Predicated region
  $region6: #{drop_path.1} parent=0 // pred_check
    _
  $region7: #{drop_path.1} parent=0 // pred_check_branch
    %10 = sbr.rel (0) target = $region9
  $region8: #{drop_path.1} parent=0 // pred_region
    _
  $region9: #{drop_path.1} parent=0 // pred_fallthru
    _
  %v11 = vld [vmem:[%s1] sm:$0xff]
  %v12 = vld [vmem:[%s1 + $0x8] sm:$0xff]
  %v13 = vld [vmem:[%s1 + $0x10] sm:$0xff]
  %v14 = vld [vmem:[%s1 + $0x18] sm:$0xff]
  %v15 = vld [vmem:[%s1 + $0x20] sm:$0xff]
  %v16 = vld [vmem:[%s1 + $0x28] sm:$0xff]
  %v17 = vld [vmem:[%s1 + $0x30] sm:$0xff]
  %v18 = vld [vmem:[%s1 + $0x38] sm:$0xff]
  %v19 = vld [vmem:[%s0] sm:$0xff]
  %21 = vset.pattern.permute.xlu0 0
  %22 = vperm.xlu0 %21, %v19
  %v23 = vpop.permute.xlu0 %22
  %v25 = vmul.f32 %v11, %v23
  %v26 = vmul.f32 %v12, %v23
  %v27 = vmul.f32 %v13, %v23
  %v28 = vmul.f32 %v14, %v23
  %v29 = vmul.f32 %v15, %v23
  %v30 = vmul.f32 %v16, %v23
  %v31 = vmul.f32 %v17, %v23
  %v32 = vmul.f32 %v18, %v23
  %33 = vst [vmem:[%s2] sm:$0xff] %v25
  %34 = vst [vmem:[%s2 + $0x8] sm:$0xff] %v26
  %35 = vst [vmem:[%s2 + $0x10] sm:$0xff] %v27
  %36 = vst [vmem:[%s2 + $0x18] sm:$0xff] %v28
  %37 = vst [vmem:[%s2 + $0x20] sm:$0xff] %v29
  %38 = vst [vmem:[%s2 + $0x28] sm:$0xff] %v30
  %39 = vst [vmem:[%s2 + $0x30] sm:$0xff] %v31
  %40 = vst [vmem:[%s2 + $0x38] sm:$0xff] %v32
  // Predicated region
  $region10: #{drop_path.1} parent=0 // pred_check
    _
  $region11: #{drop_path.1} parent=0 // pred_check_branch
    %42 = sbr.rel (0) target = $region13
  $region12: #{drop_path.1} parent=0 // pred_region
    _
  $region13: #{drop_path.1} parent=0 // pred_fallthru
    _
  // Predicated region
  $region14: #{drop_path.1} parent=0 // pred_check
    _
  $region15: #{drop_path.1} parent=0 // pred_check_branch
    %44 = sbr.rel (0) target = $region17
  $region16: #{drop_path.1} parent=0 // pred_region
    _
  $region17: #{drop_path.1} parent=0 // pred_fallthru
    _

</llo_original>
